<compile_context>
chip_gen: v5e
topology: v5e:2x2
jax: 0.10.0
libtpu: 0.0.40
codegen_flags: <defaults>
</compile_context>

<pallas_src>
import functools

import jax
import jax.numpy as jnp
from jax.experimental import pallas as pl
from jax.experimental.pallas import tpu as pltpu


def cnn_kernel(x_ref, ws_ref, cb_ref, fw_ref, fb_ref, out_ref, acc_ref, *, padding):
    # x_ref : (T, BB, E)      time-major conv input (unpadded time), bf16
    # ws_ref: (K, E, H)       conv weights, one (E, H) matmul per tap, bf16
    # cb_ref: (1, H)          conv bias, f32
    # fw_ref: (H, C)          fc weight (already transposed), f32
    # fb_ref: (1, C)          fc bias, f32
    # out_ref: (BB, C)
    # acc_ref: (T_out, BB, H) f32 VMEM scratch holding the raw conv accumulation
    T, BB, E = x_ref.shape
    K, _, H = ws_ref.shape
    T_out = acc_ref.shape[0]               # = T + 2*padding - (K - 1), stride = 1

    acc_ref[...] = jnp.zeros_like(acc_ref)

    # Free leading-dim merge: BB is a multiple of 16, so each t-slice is sublane-tile
    # aligned and (T, BB, E) -> (T*BB, E) is a layout no-op.
    xf = x_ref[...].reshape(T * BB, E)

    # K large matmuls (M = T*BB) keep the MXU pipelined instead of paying push/drain
    # overhead per tap per timestep.  K is small (e.g. 3): static unroll is fine.
    for k in range(K):
        pk = jnp.dot(xf, ws_ref[k],
                     preferred_element_type=jnp.float32).reshape(T, BB, H)
        # tap k contributes acc[t] += pk[t + k - padding] for in-range time indices;
        # out-of-range taps are the fused Conv1d zero padding.
        t0 = max(0, padding - k)
        t1 = min(T_out, T + padding - k)
        if t1 > t0:
            j0 = t0 + k - padding
            n = t1 - t0
            acc_ref[pl.ds(t0, n)] += pk[j0:j0 + n]

    # Global max-pool over time; bias + ReLU applied once AFTER the max
    # (bias constant over t, ReLU monotone -> identical result, far fewer VPU ops).
    c = jnp.max(acc_ref[...], axis=0)                          # (BB, H)
    c = jnp.maximum(c + cb_ref[...], 0.0)                      # relu(conv_max + bias)

    scores = jnp.dot(c, fw_ref[...],
                     preferred_element_type=jnp.float32) + fb_ref[...]
    out_ref[...] = scores.astype(out_ref.dtype)


def _round_up(x, m):
    return ((x + m - 1) // m) * m


def _est_vmem_bytes(T, T_out, BB, E, H, C, K):
    lane = lambda n: _round_up(n, 128)
    x_tile = 2 * T * _round_up(BB, 16) * lane(E) * 2            # bf16 x, double-buffered
    acc = T_out * _round_up(BB, 8) * lane(H) * 4                # f32 scratch
    w = 2 * (K * _round_up(E, 16) * lane(H) * 2                 # conv weight (bf16)
             + 8 * lane(H) * 4                                  # conv bias
             + _round_up(H, 8) * lane(C) * 4                    # fc weight
             + 8 * lane(C) * 4)                                 # fc bias
    out_tile = 2 * _round_up(BB, 8) * lane(C) * 4
    return x_tile + acc + w + out_tile


VMEM_BUDGET_BYTES = 48 * 1024 * 1024   # headroom on v7x (64 MiB physical per TC)


def cnn_forward(inputs, emb, conv_w, conv_b, fc_w, fc_b, *, padding=1, block_b=128):
    B, T = inputs.shape
    V, E = emb.shape
    H, _, K = conv_w.shape
    C = fc_w.shape[0]
    T_out = T + 2 * padding - (K - 1)        # stride = 1 (module default)

    # ---- batch blocking: multiple of 16 (bf16 sublane packing), VMEM-budgeted,
    #      and split so the grid has >= 2 steps when batch allows (v7x: 2 TCs). ----
    BB = min(block_b, _round_up(B, 16))
    while BB > 16 and _est_vmem_bytes(T, T_out, BB, E, H, C, K) > VMEM_BUDGET_BYTES:
        BB = _round_up(BB // 2, 16)
    if BB > 16 and _round_up(B, BB) // BB < 2:
        BB = max(16, _round_up(BB // 2, 16))
    B_pad = _round_up(B, BB)
    vmem_limit = min(VMEM_BUDGET_BYTES,
                     max(8 * 1024 * 1024, 2 * _est_vmem_bytes(T, T_out, BB, E, H, C, K)))

    # ---- glue: embedding gather + the torch .view(B, E, T) raw reshape.
    #      Cast to bf16 BEFORE the reshape/transpose/pad so the wrapper-side
    #      HBM transpose moves half the bytes. ----
    embeds = emb.astype(jnp.bfloat16)[inputs]                     # (B, T, E) bf16 gather
    # xt[t, b, e] = embeds.reshape(B, E, T)[b, e, t]  -> channels-last, time-major
    xt = jnp.transpose(embeds.reshape(B, E, T), (2, 0, 1))        # (T, B, E)
    if B_pad > B:
        xt = jnp.pad(xt, ((0, 0), (0, B_pad - B), (0, 0)))        # pad batch only

    ws = jnp.transpose(conv_w, (2, 1, 0)).astype(jnp.bfloat16)    # (K, E, H)
    cb = conv_b.reshape(1, H).astype(jnp.float32)
    fw = fc_w.T.astype(jnp.float32)                               # (H, C)
    fb = fc_b.reshape(1, C).astype(jnp.float32)

    out = pl.pallas_call(
        functools.partial(cnn_kernel, padding=padding),
        out_shape=jax.ShapeDtypeStruct((B_pad, C), jnp.float32),
        grid_spec=pltpu.PrefetchScalarGridSpec(
            num_scalar_prefetch=0,
            grid=(B_pad // BB,),
            in_specs=[
                pl.BlockSpec((T, BB, E), lambda b: (0, b, 0)),
                # grid-invariant operands: constant index_map -> DMA'd only once
                pl.BlockSpec((K, E, H), lambda b: (0, 0, 0)),
                pl.BlockSpec((1, H), lambda b: (0, 0)),
                pl.BlockSpec((H, C), lambda b: (0, 0)),
                pl.BlockSpec((1, C), lambda b: (0, 0)),
            ],
            out_specs=pl.BlockSpec((BB, C), lambda b: (b, 0)),
            scratch_shapes=[pltpu.VMEM((T_out, BB, H), jnp.float32)],
        ),
        compiler_params=pltpu.CompilerParams(
            dimension_semantics=("parallel",),
            vmem_limit_bytes=vmem_limit),
    )(xt, ws, cb, fw, fb)
    return out[:B]                                                # drop padded batch rows


def cnn_reference(inputs, emb, conv_w, conv_b, fc_w, fc_b, *, padding=1):
    """Pure-JAX mirror of the torch forward (with the kernel's bf16 input quantization)."""
    B, T = inputs.shape
    E = emb.shape[1]
    H, _, K = conv_w.shape
    T_out = T + 2 * padding - (K - 1)
    embeds = emb[inputs]                                          # (B, T, E)
    x = embeds.reshape(B, E, T)                                   # torch .view raw reshape
    xq = x.astype(jnp.bfloat16).astype(jnp.float32)
    wq = conv_w.astype(jnp.bfloat16).astype(jnp.float32)
    xp = jnp.pad(xq, ((0, 0), (0, 0), (padding, padding)))
    out = jnp.zeros((B, H, T_out), jnp.float32)
    for k in range(K):
        out = out + jnp.einsum('bet,he->bht', xp[:, :, k:k + T_out], wq[:, :, k])
    out = out + conv_b[None, :, None]
    p = jnp.maximum(out, 0.0)
    c = jnp.max(p, axis=2)                                        # (B, H)
    return c @ fc_w.T + fc_b


if __name__ == "__main__":
    # small shapes consistent with the module defaults (scaled down)
    B, T = 2, 8                 # batch, sequence length
    V, E = 100, 32              # vocab_size, embedding_dim
    H, C = 16, 4                # hidden_dim, category_size
    K, padding = 3, 1           # kernel_size, padding
    padding_idx = 0

    key = jax.random.PRNGKey(0)
    k_emb, k_cw, k_cb, k_fw, k_fb, k_in = jax.random.split(key, 6)

    emb = jax.random.normal(k_emb, (V, E), jnp.float32)
    emb = emb.at[padding_idx].set(0.0)                   # nn.Embedding padding_idx row = 0
    conv_w = jax.random.normal(k_cw, (H, E, K), jnp.float32) * 0.1
    conv_b = jax.random.normal(k_cb, (H,), jnp.float32) * 0.1
    fc_w = jax.random.normal(k_fw, (C, H), jnp.float32) * 0.1
    fc_b = jax.random.normal(k_fb, (C,), jnp.float32) * 0.1

    inputs = jax.random.randint(k_in, (B, T), 0, V, jnp.int32)

    scores = cnn_forward(inputs, emb, conv_w, conv_b, fc_w, fc_b, padding=padding)
    scores = jax.block_until_ready(scores)

    ref = cnn_reference(inputs, emb, conv_w, conv_b, fc_w, fc_b, padding=padding)
    assert scores.shape == (B, C)
    assert jnp.allclose(scores, ref, atol=1e-3, rtol=1e-3), (scores, ref)

    print("KERNEL_OK")
</pallas_src>

<mosaic_0001>
module attributes {stable_mosaic.version = 11 : i64} {
  func.func @cnn_kernel(%arg0: i32, %arg1: memref<8x16x32xbf16, #tpu.memory_space<vmem>>, %arg2: memref<3x32x16xbf16, #tpu.memory_space<vmem>>, %arg3: memref<1x16xf32, #tpu.memory_space<vmem>>, %arg4: memref<16x4xf32, #tpu.memory_space<vmem>>, %arg5: memref<1x4xf32, #tpu.memory_space<vmem>>, %arg6: memref<16x4xf32, #tpu.memory_space<vmem>>, %arg7: memref<8x16x16xf32, #tpu.memory_space<vmem>>) attributes {dimension_semantics = [#tpu.dimension_semantics<parallel>], iteration_bounds = array<i64: 1>, scalar_prefetch = 0 : i64, scratch_operands = 1 : i64, tpu.core_type = #tpu.core_type<tc>, window_params = [{transform_indices = @transform_0, window_bounds = array<i64: 8, 16, 32>}, {pipeline_mode = #tpu.pipeline_mode<synchronous>, transform_indices = @transform_1, window_bounds = array<i64: 3, 32, 16>}, {pipeline_mode = #tpu.pipeline_mode<synchronous>, transform_indices = @transform_2, window_bounds = array<i64: 1, 16>}, {pipeline_mode = #tpu.pipeline_mode<synchronous>, transform_indices = @transform_3, window_bounds = array<i64: 16, 4>}, {pipeline_mode = #tpu.pipeline_mode<synchronous>, transform_indices = @transform_4, window_bounds = array<i64: 1, 4>}, {transform_indices = @transform_5, window_bounds = array<i64: 16, 4>}]} {
    %cst = arith.constant 0.000000e+00 : f32
    %0 = vector.broadcast %cst : f32 to vector<8x16x16xf32>
    %c0 = arith.constant 0 : index
    %c0_0 = arith.constant 0 : index
    %c0_1 = arith.constant 0 : index
    %1 = vector.load %arg7[%c0, %c0_0, %c0_1] : memref<8x16x16xf32, #tpu.memory_space<vmem>>, vector<8x16x16xf32>
    tpu.vector_store %arg7[%c0, %c0_0, %c0_1], %0 {strides = array<i32>} : memref<8x16x16xf32, #tpu.memory_space<vmem>>, vector<8x16x16xf32>,
    %c0_2 = arith.constant 0 : index
    %c0_3 = arith.constant 0 : index
    %c0_4 = arith.constant 0 : index
    %2 = vector.load %arg1[%c0_2, %c0_3, %c0_4] : memref<8x16x32xbf16, #tpu.memory_space<vmem>>, vector<8x16x32xbf16>
    %3 = vector.shape_cast %2 : vector<8x16x32xbf16> to vector<128x32xbf16>
    %c0_5 = arith.constant 0 : index
    %c0_6 = arith.constant 0 : index
    %c0_7 = arith.constant 0 : index
    %4 = vector.load %arg2[%c0_5, %c0_6, %c0_7] : memref<3x32x16xbf16, #tpu.memory_space<vmem>>, vector<1x32x16xbf16>
    %5 = vector.shape_cast %4 : vector<1x32x16xbf16> to vector<32x16xbf16>
    %cst_8 = arith.constant dense<0.000000e+00> : vector<128x16xf32>
    %6 = tpu.matmul %3, %5, %cst_8 {dimension_numbers = #tpu.dot_dimension_numbers<[1], [0], [0], [1], [0, 0, 1, 1], [], []>} : vector<128x32xbf16>, vector<32x16xbf16>, vector<128x16xf32> -> vector<128x16xf32>
    %7 = vector.shape_cast %6 : vector<128x16xf32> to vector<8x16x16xf32>
    %c1 = arith.constant 1 : index
    %c0_9 = arith.constant 0 : index
    %c0_10 = arith.constant 0 : index
    %8 = vector.load %arg7[%c1, %c0_9, %c0_10] : memref<8x16x16xf32, #tpu.memory_space<vmem>>, vector<7x16x16xf32>
    %9 = vector.extract_strided_slice %7 {offsets = [0, 0, 0], sizes = [7, 16, 16], strides = [1, 1, 1]} : vector<8x16x16xf32> to vector<7x16x16xf32>
    %10 = arith.addf %8, %9 : vector<7x16x16xf32>
    %c1_11 = arith.constant 1 : index
    %c0_12 = arith.constant 0 : index
    %c0_13 = arith.constant 0 : index
    %11 = vector.load %arg7[%c1_11, %c0_12, %c0_13] : memref<8x16x16xf32, #tpu.memory_space<vmem>>, vector<7x16x16xf32>
    tpu.vector_store %arg7[%c1_11, %c0_12, %c0_13], %10 {strides = array<i32>} : memref<8x16x16xf32, #tpu.memory_space<vmem>>, vector<7x16x16xf32>,
    %c1_14 = arith.constant 1 : index
    %c0_15 = arith.constant 0 : index
    %c0_16 = arith.constant 0 : index
    %12 = vector.load %arg2[%c1_14, %c0_15, %c0_16] : memref<3x32x16xbf16, #tpu.memory_space<vmem>>, vector<1x32x16xbf16>
    %13 = vector.shape_cast %12 : vector<1x32x16xbf16> to vector<32x16xbf16>
    %cst_17 = arith.constant dense<0.000000e+00> : vector<128x16xf32>
    %14 = tpu.matmul %3, %13, %cst_17 {dimension_numbers = #tpu.dot_dimension_numbers<[1], [0], [0], [1], [0, 0, 1, 1], [], []>} : vector<128x32xbf16>, vector<32x16xbf16>, vector<128x16xf32> -> vector<128x16xf32>
    %15 = vector.shape_cast %14 : vector<128x16xf32> to vector<8x16x16xf32>
    %c0_18 = arith.constant 0 : index
    %c0_19 = arith.constant 0 : index
    %c0_20 = arith.constant 0 : index
    %16 = vector.load %arg7[%c0_18, %c0_19, %c0_20] : memref<8x16x16xf32, #tpu.memory_space<vmem>>, vector<8x16x16xf32>
    %17 = arith.addf %16, %15 : vector<8x16x16xf32>
    %c0_21 = arith.constant 0 : index
    %c0_22 = arith.constant 0 : index
    %c0_23 = arith.constant 0 : index
    %18 = vector.load %arg7[%c0_21, %c0_22, %c0_23] : memref<8x16x16xf32, #tpu.memory_space<vmem>>, vector<8x16x16xf32>
    tpu.vector_store %arg7[%c0_21, %c0_22, %c0_23], %17 {strides = array<i32>} : memref<8x16x16xf32, #tpu.memory_space<vmem>>, vector<8x16x16xf32>,
    %c2 = arith.constant 2 : index
    %c0_24 = arith.constant 0 : index
    %c0_25 = arith.constant 0 : index
    %19 = vector.load %arg2[%c2, %c0_24, %c0_25] : memref<3x32x16xbf16, #tpu.memory_space<vmem>>, vector<1x32x16xbf16>
    %20 = vector.shape_cast %19 : vector<1x32x16xbf16> to vector<32x16xbf16>
    %cst_26 = arith.constant dense<0.000000e+00> : vector<128x16xf32>
    %21 = tpu.matmul %3, %20, %cst_26 {dimension_numbers = #tpu.dot_dimension_numbers<[1], [0], [0], [1], [0, 0, 1, 1], [], []>} : vector<128x32xbf16>, vector<32x16xbf16>, vector<128x16xf32> -> vector<128x16xf32>
    %22 = vector.shape_cast %21 : vector<128x16xf32> to vector<8x16x16xf32>
    %c0_27 = arith.constant 0 : index
    %c0_28 = arith.constant 0 : index
    %c0_29 = arith.constant 0 : index
    %23 = vector.load %arg7[%c0_27, %c0_28, %c0_29] : memref<8x16x16xf32, #tpu.memory_space<vmem>>, vector<7x16x16xf32>
    %24 = vector.extract_strided_slice %22 {offsets = [1, 0, 0], sizes = [7, 16, 16], strides = [1, 1, 1]} : vector<8x16x16xf32> to vector<7x16x16xf32>
    %25 = arith.addf %23, %24 : vector<7x16x16xf32>
    %c0_30 = arith.constant 0 : index
    %c0_31 = arith.constant 0 : index
    %c0_32 = arith.constant 0 : index
    %26 = vector.load %arg7[%c0_30, %c0_31, %c0_32] : memref<8x16x16xf32, #tpu.memory_space<vmem>>, vector<7x16x16xf32>
    tpu.vector_store %arg7[%c0_30, %c0_31, %c0_32], %25 {strides = array<i32>} : memref<8x16x16xf32, #tpu.memory_space<vmem>>, vector<7x16x16xf32>,
    %c0_33 = arith.constant 0 : index
    %c0_34 = arith.constant 0 : index
    %c0_35 = arith.constant 0 : index
    %27 = vector.load %arg7[%c0_33, %c0_34, %c0_35] : memref<8x16x16xf32, #tpu.memory_space<vmem>>, vector<8x16x16xf32>
    %cst_36 = arith.constant dense<0xFF800000> : vector<16x16xf32>
    %28 = vector.multi_reduction <maximumf>, %27, %cst_36 [0] : vector<8x16x16xf32> to vector<16x16xf32>
    %c0_37 = arith.constant 0 : index
    %c0_38 = arith.constant 0 : index
    %29 = vector.load %arg3[%c0_37, %c0_38] : memref<1x16xf32, #tpu.memory_space<vmem>>, vector<1x16xf32>
    %30 = vector.broadcast %29 : vector<1x16xf32> to vector<16x16xf32>
    %31 = arith.addf %28, %30 : vector<16x16xf32>
    %cst_39 = arith.constant 0.000000e+00 : f32
    %32 = vector.broadcast %cst_39 : f32 to vector<16x16xf32>
    %33 = arith.maximumf %31, %32 : vector<16x16xf32>
    %c0_40 = arith.constant 0 : index
    %c0_41 = arith.constant 0 : index
    %34 = vector.load %arg4[%c0_40, %c0_41] : memref<16x4xf32, #tpu.memory_space<vmem>>, vector<16x4xf32>
    %cst_42 = arith.constant dense<0.000000e+00> : vector<16x4xf32>
    %35 = tpu.matmul %33, %34, %cst_42 {dimension_numbers = #tpu.dot_dimension_numbers<[1], [0], [0], [1], [0, 0, 1, 1], [], []>} : vector<16x16xf32>, vector<16x4xf32>, vector<16x4xf32> -> vector<16x4xf32>
    %c0_43 = arith.constant 0 : index
    %c0_44 = arith.constant 0 : index
    %36 = vector.load %arg5[%c0_43, %c0_44] : memref<1x4xf32, #tpu.memory_space<vmem>>, vector<1x4xf32>
    %37 = vector.broadcast %36 : vector<1x4xf32> to vector<16x4xf32>
    %38 = arith.addf %35, %37 : vector<16x4xf32>
    %c0_45 = arith.constant 0 : index
    %c0_46 = arith.constant 0 : index
    %39 = vector.load %arg6[%c0_45, %c0_46] : memref<16x4xf32, #tpu.memory_space<vmem>>, vector<16x4xf32>
    tpu.vector_store %arg6[%c0_45, %c0_46], %38 {strides = array<i32>} : memref<16x4xf32, #tpu.memory_space<vmem>>, vector<16x4xf32>,
    return
  }
  func.func @transform_0(%arg0: i32) -> (i32, i32, i32) {
    %c0_i32 = arith.constant 0 : i32
    %c0_i32_0 = arith.constant 0 : i32
    %c0_i32_1 = arith.constant 0 : i32
    return %c0_i32, %arg0, %c0_i32_0 : i32, i32, i32
  }
  func.func @transform_1(%arg0: i32) -> (i32, i32, i32) {
    %c0_i32 = arith.constant 0 : i32
    %c0_i32_0 = arith.constant 0 : i32
    %c0_i32_1 = arith.constant 0 : i32
    %c0_i32_2 = arith.constant 0 : i32
    return %c0_i32, %c0_i32_0, %c0_i32_1 : i32, i32, i32
  }
  func.func @transform_2(%arg0: i32) -> (i32, i32) {
    %c0_i32 = arith.constant 0 : i32
    %c0_i32_0 = arith.constant 0 : i32
    %c0_i32_1 = arith.constant 0 : i32
    return %c0_i32, %c0_i32_0 : i32, i32
  }
  func.func @transform_3(%arg0: i32) -> (i32, i32) {
    %c0_i32 = arith.constant 0 : i32
    %c0_i32_0 = arith.constant 0 : i32
    %c0_i32_1 = arith.constant 0 : i32
    return %c0_i32, %c0_i32_0 : i32, i32
  }
  func.func @transform_4(%arg0: i32) -> (i32, i32) {
    %c0_i32 = arith.constant 0 : i32
    %c0_i32_0 = arith.constant 0 : i32
    %c0_i32_1 = arith.constant 0 : i32
    return %c0_i32, %c0_i32_0 : i32, i32
  }
  func.func @transform_5(%arg0: i32) -> (i32, i32) {
    %c0_i32 = arith.constant 0 : i32
    %c0_i32_0 = arith.constant 0 : i32
    return %arg0, %c0_i32 : i32, i32
  }
}

</mosaic_0001>

<llo_original>
// kernel: tpu_custom_call.1
$region0: #{tpu_custom_call.1}
  #allocation0 [shape = 'u32[]', space=smem, size = 0x4, offset = 0x4, fixed_abs, tag = 'smem constant byte address 0x4 - core index']
  #allocation1 [shape = 'u32[72,128]{1,0:T(1,128)}', space=vmem, size = 0x9000, scoped, tag = 'internal scratch']
  #allocation2 [shape = 'f32[8,16,16]{2,1,0:T(8,128)}', space=vmem, size = 0x10000, scoped, tag = 'scratch operand']
  %s0 = inlined_call_operand.vmem [shape: bf16[8,16,32], index: 0, kind: input, shape index: {}]
  %s1 = inlined_call_operand.vmem [shape: bf16[3,32,16], index: 1, kind: input, shape index: {}]
  %s2 = inlined_call_operand.vmem [shape: f32[1,16], index: 2, kind: input, shape index: {}]
  %s3 = inlined_call_operand.vmem [shape: f32[16,4], index: 3, kind: input, shape index: {}]
  %s4 = inlined_call_operand.vmem [shape: f32[1,4], index: 4, kind: input, shape index: {}]
  %s5 = inlined_call_operand.vmem [shape: f32[16,4], index: 5, kind: output, shape index: {}]
  %s6 = sld [smem:[#allocation0]]
  $region30: #{tpu_custom_call.1} parent=0
    _
  %s8 = ssub.s32 1, %s6
  %s9 = scalar_select 0, %s8, %s6
  // Predicated region
  $region2: #{tpu_custom_call.1} parent=0 // pred_check
    _
  $region3: #{tpu_custom_call.1} parent=0 // pred_check_branch
    %11 = sbr.rel (0) target = $region5
  $region4: #{tpu_custom_call.1} parent=0 // pred_region
    _
  $region5: #{tpu_custom_call.1} parent=0 // pred_fallthru
    _
  // Predicated region
  $region6: #{tpu_custom_call.1} parent=0 // pred_check
    _
  $region7: #{tpu_custom_call.1} parent=0 // pred_check_branch
    %13 = sbr.rel (0) target = $region9
  $region8: #{tpu_custom_call.1} parent=0 // pred_region
    _
  $region9: #{tpu_custom_call.1} parent=0 // pred_fallthru
    _
  // Predicated region
  $region10: #{tpu_custom_call.1} parent=0 // pred_check
    _
  $region11: #{tpu_custom_call.1} parent=0 // pred_check_branch
    %15 = sbr.rel (0) target = $region13
  $region12: #{tpu_custom_call.1} parent=0 // pred_region
    _
  $region13: #{tpu_custom_call.1} parent=0 // pred_fallthru
    _
  // Predicated region
  $region14: #{tpu_custom_call.1} parent=0 // pred_check
    _
  $region15: #{tpu_custom_call.1} parent=0 // pred_check_branch
    %17 = sbr.rel (0) target = $region17
  $region16: #{tpu_custom_call.1} parent=0 // pred_region
    _
  $region17: #{tpu_custom_call.1} parent=0 // pred_fallthru
    _
  // Predicated region
  $region18: #{tpu_custom_call.1} parent=0 // pred_check
    _
  $region19: #{tpu_custom_call.1} parent=0 // pred_check_branch
    %19 = sbr.rel (0) target = $region21
  $region20: #{tpu_custom_call.1} parent=0 // pred_region
    _
  $region21: #{tpu_custom_call.1} parent=0 // pred_fallthru
    _
  %vm21 = vcmask 130048
  %22 = vst.msk [vmem:[#allocation2] sm:$0xff] %vm21, 0.0
  %23 = vst.msk [vmem:[#allocation2 + $0x8] sm:$0xff] %vm21, 0.0
  %24 = vst.msk [vmem:[#allocation2 + $0x10] sm:$0xff] %vm21, 0.0
  %25 = vst.msk [vmem:[#allocation2 + $0x18] sm:$0xff] %vm21, 0.0
  %26 = vst.msk [vmem:[#allocation2 + $0x20] sm:$0xff] %vm21, 0.0
  %27 = vst.msk [vmem:[#allocation2 + $0x28] sm:$0xff] %vm21, 0.0
  %28 = vst.msk [vmem:[#allocation2 + $0x30] sm:$0xff] %vm21, 0.0
  %29 = vst.msk [vmem:[#allocation2 + $0x38] sm:$0xff] %vm21, 0.0
  %30 = vst.msk [vmem:[#allocation2 + $0x40] sm:$0xff] %vm21, 0.0
  %31 = vst.msk [vmem:[#allocation2 + $0x48] sm:$0xff] %vm21, 0.0
  %32 = vst.msk [vmem:[#allocation2 + $0x50] sm:$0xff] %vm21, 0.0
  %33 = vst.msk [vmem:[#allocation2 + $0x58] sm:$0xff] %vm21, 0.0
  %34 = vst.msk [vmem:[#allocation2 + $0x60] sm:$0xff] %vm21, 0.0
  %35 = vst.msk [vmem:[#allocation2 + $0x68] sm:$0xff] %vm21, 0.0
  %36 = vst.msk [vmem:[#allocation2 + $0x70] sm:$0xff] %vm21, 0.0
  %37 = vst.msk [vmem:[#allocation2 + $0x78] sm:$0xff] %vm21, 0.0
  %v38 = vld [vmem:[%s0] sm:$0xf]
  %v39 = vld [vmem:[%s0 + $0x4] sm:$0xf]
  %v40 = vld [vmem:[%s0 + $0x8] sm:$0xf]
  %v41 = vld [vmem:[%s0 + $0xc] sm:$0xf]
  %v42 = vld [vmem:[%s0 + $0x10] sm:$0xf]
  %v43 = vld [vmem:[%s0 + $0x14] sm:$0xf]
  %v44 = vld [vmem:[%s0 + $0x18] sm:$0xf]
  %v45 = vld [vmem:[%s0 + $0x1c] sm:$0xf]
  %v46 = vld [vmem:[%s0 + $0x20] sm:$0xf]
  %v47 = vld [vmem:[%s0 + $0x24] sm:$0xf]
  %v48 = vld [vmem:[%s0 + $0x28] sm:$0xf]
  %v49 = vld [vmem:[%s0 + $0x2c] sm:$0xf]
  %v50 = vld [vmem:[%s0 + $0x30] sm:$0xf]
  %v51 = vld [vmem:[%s0 + $0x34] sm:$0xf]
  %v52 = vld [vmem:[%s0 + $0x38] sm:$0xf]
  %v53 = vld [vmem:[%s0 + $0x3c] sm:$0xf]
  %v54 = vld [vmem:[%s1] sm:$0xf]
  %v55 = vld [vmem:[%s1 + $0x4] sm:$0xf]
  %v56 = vld [vmem:[%s1 + $0x8] sm:$0xf]
  %v57 = vld [vmem:[%s1 + $0xc] sm:$0xf]
  %v74 = vunpack.c.l.b16 %v38
  %v75 = vunpack.c.l.b16 %v39
  %v76 = vunpack.c.l.b16 %v40
  %v77 = vunpack.c.l.b16 %v41
  %v78 = vunpack.c.l.b16 %v42
  %v79 = vunpack.c.l.b16 %v43
  %v80 = vunpack.c.l.b16 %v44
  %v81 = vunpack.c.l.b16 %v45
  %v82 = vunpack.c.l.b16 %v46
  %v83 = vunpack.c.l.b16 %v47
  %v84 = vunpack.c.l.b16 %v48
  %v85 = vunpack.c.l.b16 %v49
  %v86 = vunpack.c.l.b16 %v50
  %v87 = vunpack.c.l.b16 %v51
  %v88 = vunpack.c.l.b16 %v52
  %v89 = vunpack.c.l.b16 %v53
  %v90 = vpack.c.b16 %v75, %v74
  %v91 = vpack.c.b16 %v77, %v76
  %v92 = vpack.c.b16 %v79, %v78
  %v93 = vpack.c.b16 %v81, %v80
  %v94 = vpack.c.b16 %v83, %v82
  %v95 = vpack.c.b16 %v85, %v84
  %v96 = vpack.c.b16 %v87, %v86
  %v97 = vpack.c.b16 %v89, %v88
  %v102 = vunpack.c.l.b16 %v54
  %v103 = vunpack.c.l.b16 %v55
  %v104 = vunpack.c.l.b16 %v56
  %v105 = vunpack.c.l.b16 %v57
  %v106 = vpack.c.b16 %v103, %v102
  %v107 = vpack.c.b16 %v105, %v104
  %vm110 = vcmask 261120
  %v112 = vsel %vm110, %v90, 0
  %v115 = vsel %vm110, %v91, 0
  %v118 = vsel %vm110, %v92, 0
  %v121 = vsel %vm110, %v93, 0
  %v124 = vsel %vm110, %v94, 0
  %v127 = vsel %vm110, %v95, 0
  %v130 = vsel %vm110, %v96, 0
  %v133 = vsel %vm110, %v97, 0
  %135 = vmatpush.bf16.msra.mxu0 0
  %136 = vmatpush.bf16.msra.mxu0 0
  %137 = vmatpush.bf16.msra.mxu0 0
  %138 = vmatpush.bf16.msra.mxu0 0
  %139 = vmatpush.bf16.msra.mxu0 0
  %140 = vmatpush.bf16.msra.mxu0 0
  %141 = vmatpush.bf16.msra.mxu0 %v107
  %142 = vmatpush.bf16.msra.mxu0 %v106
  %143 = vmatmul.bf16.gmra.mxu0 %v112
  %v144 = vpop.f32.mrf.mxu0
  %v145 = vadd.f32 0.0, %v144
  %v146 = vpop.f32.mrf.mxu0
  %v147 = vadd.f32 0.0, %v146
  %148 = vmatmul.bf16.gmra.mxu0 %v115
  %v149 = vpop.f32.mrf.mxu0
  %v150 = vadd.f32 0.0, %v149
  %v151 = vpop.f32.mrf.mxu0
  %v152 = vadd.f32 0.0, %v151
  %153 = vmatmul.bf16.gmra.mxu0 %v118
  %v154 = vpop.f32.mrf.mxu0
  %v155 = vadd.f32 0.0, %v154
  %v156 = vpop.f32.mrf.mxu0
  %v157 = vadd.f32 0.0, %v156
  %158 = vmatmul.bf16.gmra.mxu0 %v121
  %v159 = vpop.f32.mrf.mxu0
  %v160 = vadd.f32 0.0, %v159
  %v161 = vpop.f32.mrf.mxu0
  %v162 = vadd.f32 0.0, %v161
  %163 = vmatmul.bf16.gmra.mxu0 %v124
  %v164 = vpop.f32.mrf.mxu0
  %v165 = vadd.f32 0.0, %v164
  %v166 = vpop.f32.mrf.mxu0
  %v167 = vadd.f32 0.0, %v166
  %168 = vmatmul.bf16.gmra.mxu0 %v127
  %v169 = vpop.f32.mrf.mxu0
  %v170 = vadd.f32 0.0, %v169
  %v171 = vpop.f32.mrf.mxu0
  %v172 = vadd.f32 0.0, %v171
  %173 = vmatmul.bf16.gmra.mxu0 %v130
  %v174 = vpop.f32.mrf.mxu0
  %v175 = vadd.f32 0.0, %v174
  %v176 = vpop.f32.mrf.mxu0
  %v177 = vadd.f32 0.0, %v176
  %178 = vmatmul.bf16.gmra.mxu0 %v133
  %v179 = vpop.f32.mrf.mxu0
  %v180 = vpop.f32.mrf.mxu0
  %181 = vdwg.mxu0
  %s182 = scalar_lea.vmem [#allocation2], 16
  %v183 = vld [vmem:[%s182] sm:$0xff]
  %v184 = vld [vmem:[%s182 + $0x8] sm:$0xff]
  %v185 = vld [vmem:[%s182 + $0x10] sm:$0xff]
  %v186 = vld [vmem:[%s182 + $0x18] sm:$0xff]
  %v187 = vld [vmem:[%s182 + $0x20] sm:$0xff]
  %v188 = vld [vmem:[%s182 + $0x28] sm:$0xff]
  %v189 = vld [vmem:[%s182 + $0x30] sm:$0xff]
  %v190 = vld [vmem:[%s182 + $0x38] sm:$0xff]
  %v191 = vld [vmem:[%s182 + $0x40] sm:$0xff]
  %v192 = vld [vmem:[%s182 + $0x48] sm:$0xff]
  %v193 = vld [vmem:[%s182 + $0x50] sm:$0xff]
  %v194 = vld [vmem:[%s182 + $0x58] sm:$0xff]
  %v195 = vld [vmem:[%s182 + $0x60] sm:$0xff]
  %v196 = vld [vmem:[%s182 + $0x68] sm:$0xff]
  %v197 = vadd.f32 %v183, %v145
  %v198 = vadd.f32 %v184, %v147
  %v199 = vadd.f32 %v185, %v150
  %v200 = vadd.f32 %v186, %v152
  %v201 = vadd.f32 %v187, %v155
  %v202 = vadd.f32 %v188, %v157
  %v203 = vadd.f32 %v189, %v160
  %v204 = vadd.f32 %v190, %v162
  %v205 = vadd.f32 %v191, %v165
  %v206 = vadd.f32 %v192, %v167
  %v207 = vadd.f32 %v193, %v170
  %v208 = vadd.f32 %v194, %v172
  %v209 = vadd.f32 %v195, %v175
  %v210 = vadd.f32 %v196, %v177
  %211 = vst.msk [vmem:[%s182] sm:$0xff] %vm21, %v197
  %212 = vst.msk [vmem:[%s182 + $0x8] sm:$0xff] %vm21, %v198
  %213 = vst.msk [vmem:[%s182 + $0x10] sm:$0xff] %vm21, %v199
  %214 = vst.msk [vmem:[%s182 + $0x18] sm:$0xff] %vm21, %v200
  %215 = vst.msk [vmem:[%s182 + $0x20] sm:$0xff] %vm21, %v201
  %216 = vst.msk [vmem:[%s182 + $0x28] sm:$0xff] %vm21, %v202
  %217 = vst.msk [vmem:[%s182 + $0x30] sm:$0xff] %vm21, %v203
  %218 = vst.msk [vmem:[%s182 + $0x38] sm:$0xff] %vm21, %v204
  %219 = vst.msk [vmem:[%s182 + $0x40] sm:$0xff] %vm21, %v205
  %220 = vst.msk [vmem:[%s182 + $0x48] sm:$0xff] %vm21, %v206
  %221 = vst.msk [vmem:[%s182 + $0x50] sm:$0xff] %vm21, %v207
  %222 = vst.msk [vmem:[%s182 + $0x58] sm:$0xff] %vm21, %v208
  %223 = vst.msk [vmem:[%s182 + $0x60] sm:$0xff] %vm21, %v209
  %224 = vst.msk [vmem:[%s182 + $0x68] sm:$0xff] %vm21, %v210
  %s225 = scalar_lea.vmem %s1, 16
  %v226 = vld [vmem:[%s225] sm:$0xf]
  %v227 = vld [vmem:[%s225 + $0x4] sm:$0xf]
  %v228 = vld [vmem:[%s225 + $0x8] sm:$0xf]
  %v229 = vld [vmem:[%s225 + $0xc] sm:$0xf]
  %v234 = vunpack.c.l.b16 %v226
  %v235 = vunpack.c.l.b16 %v227
  %v236 = vunpack.c.l.b16 %v228
  %v237 = vunpack.c.l.b16 %v229
  %v238 = vpack.c.b16 %v235, %v234
  %v239 = vpack.c.b16 %v237, %v236
  %242 = vmatpush.bf16.msra.mxu0 0
  %243 = vmatpush.bf16.msra.mxu0 0
  %244 = vmatpush.bf16.msra.mxu0 0
  %245 = vmatpush.bf16.msra.mxu0 0
  %246 = vmatpush.bf16.msra.mxu0 0
  %247 = vmatpush.bf16.msra.mxu0 0
  %248 = vmatpush.bf16.msra.mxu0 %v239
  %249 = vmatpush.bf16.msra.mxu0 %v238
  %250 = vmatmul.bf16.gmra.mxu0 %v112
  %v251 = vpop.f32.mrf.mxu0
  %v252 = vadd.f32 0.0, %v251
  %v253 = vpop.f32.mrf.mxu0
  %v254 = vadd.f32 0.0, %v253
  %255 = vmatmul.bf16.gmra.mxu0 %v115
  %v256 = vpop.f32.mrf.mxu0
  %v257 = vadd.f32 0.0, %v256
  %v258 = vpop.f32.mrf.mxu0
  %v259 = vadd.f32 0.0, %v258
  %260 = vmatmul.bf16.gmra.mxu0 %v118
  %v261 = vpop.f32.mrf.mxu0
  %v262 = vadd.f32 0.0, %v261
  %v263 = vpop.f32.mrf.mxu0
  %v264 = vadd.f32 0.0, %v263
  %265 = vmatmul.bf16.gmra.mxu0 %v121
  %v266 = vpop.f32.mrf.mxu0
  %v267 = vadd.f32 0.0, %v266
  %v268 = vpop.f32.mrf.mxu0
  %v269 = vadd.f32 0.0, %v268
  %270 = vmatmul.bf16.gmra.mxu0 %v124
  %v271 = vpop.f32.mrf.mxu0
  %v272 = vadd.f32 0.0, %v271
  %v273 = vpop.f32.mrf.mxu0
  %v274 = vadd.f32 0.0, %v273
  %275 = vmatmul.bf16.gmra.mxu0 %v127
  %v276 = vpop.f32.mrf.mxu0
  %v277 = vadd.f32 0.0, %v276
  %v278 = vpop.f32.mrf.mxu0
  %v279 = vadd.f32 0.0, %v278
  %280 = vmatmul.bf16.gmra.mxu0 %v130
  %v281 = vpop.f32.mrf.mxu0
  %v282 = vadd.f32 0.0, %v281
  %v283 = vpop.f32.mrf.mxu0
  %v284 = vadd.f32 0.0, %v283
  %285 = vmatmul.bf16.gmra.mxu0 %v133
  %v286 = vpop.f32.mrf.mxu0
  %v287 = vadd.f32 0.0, %v286
  %v288 = vpop.f32.mrf.mxu0
  %v289 = vadd.f32 0.0, %v288
  %290 = vdwg.mxu0
  %v291 = vld [vmem:[#allocation2] sm:$0xff]
  %v292 = vld [vmem:[#allocation2 + $0x8] sm:$0xff]
  %v293 = vld [vmem:[#allocation2 + $0x10] sm:$0xff]
  %v294 = vld [vmem:[#allocation2 + $0x18] sm:$0xff]
  %v295 = vld [vmem:[#allocation2 + $0x20] sm:$0xff]
  %v296 = vld [vmem:[#allocation2 + $0x28] sm:$0xff]
  %v297 = vld [vmem:[#allocation2 + $0x30] sm:$0xff]
  %v298 = vld [vmem:[#allocation2 + $0x38] sm:$0xff]
  %v299 = vld [vmem:[#allocation2 + $0x40] sm:$0xff]
  %v300 = vld [vmem:[#allocation2 + $0x48] sm:$0xff]
  %v301 = vld [vmem:[#allocation2 + $0x50] sm:$0xff]
  %v302 = vld [vmem:[#allocation2 + $0x58] sm:$0xff]
  %v303 = vld [vmem:[#allocation2 + $0x60] sm:$0xff]
  %v304 = vld [vmem:[#allocation2 + $0x68] sm:$0xff]
  %v305 = vld [vmem:[#allocation2 + $0x70] sm:$0xff]
  %v306 = vld [vmem:[#allocation2 + $0x78] sm:$0xff]
  %v307 = vadd.f32 %v291, %v252
  %v308 = vadd.f32 %v292, %v254
  %v309 = vadd.f32 %v293, %v257
  %v310 = vadd.f32 %v294, %v259
  %v311 = vadd.f32 %v295, %v262
  %v312 = vadd.f32 %v296, %v264
  %v313 = vadd.f32 %v297, %v267
  %v314 = vadd.f32 %v298, %v269
  %v315 = vadd.f32 %v299, %v272
  %v316 = vadd.f32 %v300, %v274
  %v317 = vadd.f32 %v301, %v277
  %v318 = vadd.f32 %v302, %v279
  %v319 = vadd.f32 %v303, %v282
  %v320 = vadd.f32 %v304, %v284
  %v321 = vadd.f32 %v305, %v287
  %v322 = vadd.f32 %v306, %v289
  %323 = vst.msk [vmem:[#allocation2] sm:$0xff] %vm21, %v307
  %324 = vst.msk [vmem:[#allocation2 + $0x8] sm:$0xff] %vm21, %v308
  %325 = vst.msk [vmem:[#allocation2 + $0x10] sm:$0xff] %vm21, %v309
  %326 = vst.msk [vmem:[#allocation2 + $0x18] sm:$0xff] %vm21, %v310
  %327 = vst.msk [vmem:[#allocation2 + $0x20] sm:$0xff] %vm21, %v311
  %328 = vst.msk [vmem:[#allocation2 + $0x28] sm:$0xff] %vm21, %v312
  %329 = vst.msk [vmem:[#allocation2 + $0x30] sm:$0xff] %vm21, %v313
  %330 = vst.msk [vmem:[#allocation2 + $0x38] sm:$0xff] %vm21, %v314
  %331 = vst.msk [vmem:[#allocation2 + $0x40] sm:$0xff] %vm21, %v315
  %332 = vst.msk [vmem:[#allocation2 + $0x48] sm:$0xff] %vm21, %v316
  %333 = vst.msk [vmem:[#allocation2 + $0x50] sm:$0xff] %vm21, %v317
  %334 = vst.msk [vmem:[#allocation2 + $0x58] sm:$0xff] %vm21, %v318
  %335 = vst.msk [vmem:[#allocation2 + $0x60] sm:$0xff] %vm21, %v319
  %336 = vst.msk [vmem:[#allocation2 + $0x68] sm:$0xff] %vm21, %v320
  %337 = vst.msk [vmem:[#allocation2 + $0x70] sm:$0xff] %vm21, %v321
  %338 = vst.msk [vmem:[#allocation2 + $0x78] sm:$0xff] %vm21, %v322
  %s339 = scalar_lea.vmem %s1, 32
  %v340 = vld [vmem:[%s339] sm:$0xf]
  %v341 = vld [vmem:[%s339 + $0x4] sm:$0xf]
  %v342 = vld [vmem:[%s339 + $0x8] sm:$0xf]
  %v343 = vld [vmem:[%s339 + $0xc] sm:$0xf]
  %v348 = vunpack.c.l.b16 %v340
  %v349 = vunpack.c.l.b16 %v341
  %v350 = vunpack.c.l.b16 %v342
  %v351 = vunpack.c.l.b16 %v343
  %v352 = vpack.c.b16 %v349, %v348
  %v353 = vpack.c.b16 %v351, %v350
  %356 = vmatpush.bf16.msra.mxu0 0
  %357 = vmatpush.bf16.msra.mxu0 0
  %358 = vmatpush.bf16.msra.mxu0 0
  %359 = vmatpush.bf16.msra.mxu0 0
  %360 = vmatpush.bf16.msra.mxu0 0
  %361 = vmatpush.bf16.msra.mxu0 0
  %362 = vmatpush.bf16.msra.mxu0 %v353
  %363 = vmatpush.bf16.msra.mxu0 %v352
  %364 = vmatmul.bf16.gmra.mxu0 %v112
  %v365 = vpop.f32.mrf.mxu0
  %v366 = vpop.f32.mrf.mxu0
  %367 = vmatmul.bf16.gmra.mxu0 %v115
  %v368 = vpop.f32.mrf.mxu0
  %v369 = vadd.f32 0.0, %v368
  %v370 = vpop.f32.mrf.mxu0
  %v371 = vadd.f32 0.0, %v370
  %372 = vmatmul.bf16.gmra.mxu0 %v118
  %v373 = vpop.f32.mrf.mxu0
  %v374 = vadd.f32 0.0, %v373
  %v375 = vpop.f32.mrf.mxu0
  %v376 = vadd.f32 0.0, %v375
  %377 = vmatmul.bf16.gmra.mxu0 %v121
  %v378 = vpop.f32.mrf.mxu0
  %v379 = vadd.f32 0.0, %v378
  %v380 = vpop.f32.mrf.mxu0
  %v381 = vadd.f32 0.0, %v380
  %382 = vmatmul.bf16.gmra.mxu0 %v124
  %v383 = vpop.f32.mrf.mxu0
  %v384 = vadd.f32 0.0, %v383
  %v385 = vpop.f32.mrf.mxu0
  %v386 = vadd.f32 0.0, %v385
  %387 = vmatmul.bf16.gmra.mxu0 %v127
  %v388 = vpop.f32.mrf.mxu0
  %v389 = vadd.f32 0.0, %v388
  %v390 = vpop.f32.mrf.mxu0
  %v391 = vadd.f32 0.0, %v390
  %392 = vmatmul.bf16.gmra.mxu0 %v130
  %v393 = vpop.f32.mrf.mxu0
  %v394 = vadd.f32 0.0, %v393
  %v395 = vpop.f32.mrf.mxu0
  %v396 = vadd.f32 0.0, %v395
  %397 = vmatmul.bf16.gmra.mxu0 %v133
  %v398 = vpop.f32.mrf.mxu0
  %v399 = vadd.f32 0.0, %v398
  %v400 = vpop.f32.mrf.mxu0
  %v401 = vadd.f32 0.0, %v400
  %402 = vdwg.mxu0
  %v403 = vld [vmem:[#allocation2] sm:$0xff]
  %v404 = vld [vmem:[#allocation2 + $0x8] sm:$0xff]
  %v405 = vld [vmem:[#allocation2 + $0x10] sm:$0xff]
  %v406 = vld [vmem:[#allocation2 + $0x18] sm:$0xff]
  %v407 = vld [vmem:[#allocation2 + $0x20] sm:$0xff]
  %v408 = vld [vmem:[#allocation2 + $0x28] sm:$0xff]
  %v409 = vld [vmem:[#allocation2 + $0x30] sm:$0xff]
  %v410 = vld [vmem:[#allocation2 + $0x38] sm:$0xff]
  %v411 = vld [vmem:[#allocation2 + $0x40] sm:$0xff]
  %v412 = vld [vmem:[#allocation2 + $0x48] sm:$0xff]
  %v413 = vld [vmem:[#allocation2 + $0x50] sm:$0xff]
  %v414 = vld [vmem:[#allocation2 + $0x58] sm:$0xff]
  %v415 = vld [vmem:[#allocation2 + $0x60] sm:$0xff]
  %v416 = vld [vmem:[#allocation2 + $0x68] sm:$0xff]
  %v417 = vadd.f32 %v403, %v369
  %v418 = vadd.f32 %v404, %v371
  %v419 = vadd.f32 %v405, %v374
  %v420 = vadd.f32 %v406, %v376
  %v421 = vadd.f32 %v407, %v379
  %v422 = vadd.f32 %v408, %v381
  %v423 = vadd.f32 %v409, %v384
  %v424 = vadd.f32 %v410, %v386
  %v425 = vadd.f32 %v411, %v389
  %v426 = vadd.f32 %v412, %v391
  %v427 = vadd.f32 %v413, %v394
  %v428 = vadd.f32 %v414, %v396
  %v429 = vadd.f32 %v415, %v399
  %v430 = vadd.f32 %v416, %v401
  %431 = vst.msk [vmem:[#allocation2] sm:$0xff] %vm21, %v417
  %432 = vst.msk [vmem:[#allocation2 + $0x8] sm:$0xff] %vm21, %v418
  %433 = vst.msk [vmem:[#allocation2 + $0x10] sm:$0xff] %vm21, %v419
  %434 = vst.msk [vmem:[#allocation2 + $0x18] sm:$0xff] %vm21, %v420
  %435 = vst.msk [vmem:[#allocation2 + $0x20] sm:$0xff] %vm21, %v421
  %436 = vst.msk [vmem:[#allocation2 + $0x28] sm:$0xff] %vm21, %v422
  %437 = vst.msk [vmem:[#allocation2 + $0x30] sm:$0xff] %vm21, %v423
  %438 = vst.msk [vmem:[#allocation2 + $0x38] sm:$0xff] %vm21, %v424
  %439 = vst.msk [vmem:[#allocation2 + $0x40] sm:$0xff] %vm21, %v425
  %440 = vst.msk [vmem:[#allocation2 + $0x48] sm:$0xff] %vm21, %v426
  %441 = vst.msk [vmem:[#allocation2 + $0x50] sm:$0xff] %vm21, %v427
  %442 = vst.msk [vmem:[#allocation2 + $0x58] sm:$0xff] %vm21, %v428
  %443 = vst.msk [vmem:[#allocation2 + $0x60] sm:$0xff] %vm21, %v429
  %444 = vst.msk [vmem:[#allocation2 + $0x68] sm:$0xff] %vm21, %v430
  %v445 = vld [vmem:[#allocation2] sm:$0xff]
  %v446 = vld [vmem:[#allocation2 + $0x8] sm:$0xff]
  %v447 = vld [vmem:[#allocation2 + $0x10] sm:$0xff]
  %v448 = vld [vmem:[#allocation2 + $0x18] sm:$0xff]
  %v449 = vld [vmem:[#allocation2 + $0x20] sm:$0xff]
  %v450 = vld [vmem:[#allocation2 + $0x28] sm:$0xff]
  %v451 = vld [vmem:[#allocation2 + $0x30] sm:$0xff]
  %v452 = vld [vmem:[#allocation2 + $0x38] sm:$0xff]
  %v453 = vld [vmem:[#allocation2 + $0x40] sm:$0xff]
  %v454 = vld [vmem:[#allocation2 + $0x48] sm:$0xff]
  %v455 = vld [vmem:[#allocation2 + $0x50] sm:$0xff]
  %v456 = vld [vmem:[#allocation2 + $0x58] sm:$0xff]
  %v457 = vld [vmem:[#allocation2 + $0x60] sm:$0xff]
  %v458 = vld [vmem:[#allocation2 + $0x68] sm:$0xff]
  %v459 = vld [vmem:[#allocation2 + $0x70] sm:$0xff]
  %v460 = vld [vmem:[#allocation2 + $0x78] sm:$0xff]
  %v461 = vsel %vm21, %v445, -inf
  %v462 = vsel %vm21, %v447, -inf
  %v463 = vsel %vm21, %v449, -inf
  %v464 = vmax.f32 %v461, %v463
  %v465 = vsel %vm21, %v451, -inf
  %v466 = vmax.f32 %v462, %v465
  %v467 = vsel %vm21, %v453, -inf
  %v468 = vmax.f32 %v464, %v467
  %v469 = vsel %vm21, %v455, -inf
  %v470 = vmax.f32 %v466, %v469
  %v471 = vsel %vm21, %v457, -inf
  %v472 = vmax.f32 %v468, %v471
  %v473 = vsel %vm21, %v459, -inf
  %v474 = vmax.f32 %v470, %v473
  %v475 = vmax.f32 %v472, %v474
  %v476 = vsel %vm21, %v446, -inf
  %v477 = vsel %vm21, %v448, -inf
  %v478 = vsel %vm21, %v450, -inf
  %v479 = vmax.f32 %v476, %v478
  %v480 = vsel %vm21, %v452, -inf
  %v481 = vmax.f32 %v477, %v480
  %v482 = vsel %vm21, %v454, -inf
  %v483 = vmax.f32 %v479, %v482
  %v484 = vsel %vm21, %v456, -inf
  %v485 = vmax.f32 %v481, %v484
  %v486 = vsel %vm21, %v458, -inf
  %v487 = vmax.f32 %v483, %v486
  %v488 = vsel %vm21, %v460, -inf
  %v489 = vmax.f32 %v485, %v488
  %v490 = vmax.f32 %v487, %v489
  %v491 = vld [vmem:[%s2] sm:$0x1]
  %v493 = vperm.slane %v491, 0
  %v495 = vadd.f32 %v475, %v493
  %v496 = vadd.f32 %v490, %v493
  %v497 = vmax.f32 %v495, 0.0
  %v498 = vmax.f32 %v496, 0.0
  %v499 = vld [vmem:[%s3] sm:$0xff]
  %v500 = vld [vmem:[%s3 + $0x8] sm:$0xff]
  %v501 = vld [vmem:[%s4] sm:$0x1]
  %v503 = vperm.slane %v501, 0
  %v506 = vsel %vm21, %v497, 0
  %v509 = vsel %vm21, %v498, 0
  %511 = vmatpush.msra.mxu0 0.0
  %512 = vmatpush.msra.mxu0 0.0
  %513 = vmatpush.msra.mxu0 0.0
  %514 = vmatpush.msra.mxu0 0.0
  %515 = vmatpush.msra.mxu0 0.0
  %516 = vmatpush.msra.mxu0 0.0
  %517 = vmatpush.msra.mxu0 0.0
  %518 = vmatpush.msra.mxu0 0.0
  %519 = vmatpush.msra.mxu0 0.0
  %520 = vmatpush.msra.mxu0 0.0
  %521 = vmatpush.msra.mxu0 0.0
  %522 = vmatpush.msra.mxu0 0.0
  %523 = vmatpush.msra.mxu0 0.0
  %524 = vmatpush.msra.mxu0 0.0
  %525 = vmatpush.msra.mxu0 %v500
  %526 = vmatpush.msra.mxu0 %v499
  %527 = vmatmul.f32.gmra.mxu0 %v506
  %v528 = vpop.f32.mrf.mxu0
  %v529 = vadd.f32 %v503, %v528
  %530 = vmatmul.f32.gmra.mxu0 %v509
  %v531 = vpop.f32.mrf.mxu0
  %v532 = vadd.f32 %v503, %v531
  %533 = vdwg.mxu0
  %vm534 = vcmask 31744
  %535 = vst.msk [vmem:[%s5] sm:$0xff] %vm534, %v529
  %536 = vst.msk [vmem:[%s5 + $0x8] sm:$0xff] %vm534, %v532
  // Predicated region
  $region22: #{tpu_custom_call.1} parent=0 // pred_check
    _
  $region23: #{tpu_custom_call.1} parent=0 // pred_check_branch
    %538 = sbr.rel (0) target = $region25
  $region24: #{tpu_custom_call.1} parent=0 // pred_region
    _
  $region25: #{tpu_custom_call.1} parent=0 // pred_fallthru
    _
  // Predicated region
  $region26: #{tpu_custom_call.1} parent=0 // pred_check
    _
  $region27: #{tpu_custom_call.1} parent=0 // pred_check_branch
    %540 = sbr.rel (0) target = $region29
  $region28: #{tpu_custom_call.1} parent=0 // pred_region
    _
  $region29: #{tpu_custom_call.1} parent=0 // pred_fallthru
    _

</llo_original>
